<compile_context>
chip_gen: v5e
topology: v5e:2x2
jax: 0.10.0
libtpu: 0.0.40
codegen_flags: <defaults>
</compile_context>

<pallas_src>
import functools

import numpy as np

import jax
import jax.numpy as jnp
from jax import lax
from jax.experimental import pallas as pl
from jax.experimental.pallas import tpu as pltpu


def _round_up(x: int, m: int) -> int:
    return ((x + m - 1) // m) * m


# ---------------------------------------------------------------------------
# Sinusoidal table (parameter setup, matches Embedder.sinusoidal)
# ---------------------------------------------------------------------------
def sinusoidal(steps: int, channels: int) -> jnp.ndarray:
    pos = jnp.arange(steps, dtype=jnp.float32)
    i = jnp.arange(0, channels, 2, dtype=jnp.float32)
    context = pos[:, None] * jnp.exp(-np.log(10000.0) * i / channels)[None]
    # stack([sin, cos], axis=-1).reshape(S, C) -> interleaved sin/cos
    return jnp.stack([jnp.sin(context), jnp.cos(context)], axis=-1).reshape(
        steps, channels
    )


def _pad2d(a: jnp.ndarray, rows: int, cols: int, dtype) -> jnp.ndarray:
    out = jnp.zeros((rows, cols), dtype)
    return out.at[: a.shape[0], : a.shape[1]].set(a.astype(dtype))


# ---------------------------------------------------------------------------
# One-off parameter prep (hoisted out of the per-call path; call once).
# ---------------------------------------------------------------------------
def prepare_embedder_params(buffer, weights, biases, fold_first_layer=True):
    """Pad to lane-dense layouts and pre-cast MXU operands to bf16.

    If `fold_first_layer`, layer 0 (Linear + SiLU) is folded into the table:
        table = silu(buffer @ W0 + b0)      # [S, channels], one-off f32
    so the kernel only runs the remaining layers.

    Returns (table_p [s_pad, d0_pad] bf16,
             tuple of (w_p bf16 [in_pad, out_pad], b_p f32 [1, out_pad])).
    """
    buffer = jnp.asarray(buffer, jnp.float32)
    weights = [jnp.asarray(w, jnp.float32) for w in weights]
    biases = [jnp.asarray(b, jnp.float32).reshape(1, -1) for b in biases]

    if fold_first_layer:
        t = buffer @ weights[0] + biases[0]
        table = t * jax.nn.sigmoid(t)  # SiLU, computed once in f32
        weights, biases = weights[1:], biases[1:]
    else:
        table = buffer

    s_pad = _round_up(table.shape[0], 8)
    dims = [table.shape[1]] + [w.shape[1] for w in weights]
    dims_p = [_round_up(d, 128) for d in dims]

    table_p = _pad2d(table, s_pad, dims_p[0], jnp.bfloat16)
    layers = tuple(
        (
            _pad2d(w, dims_p[l], dims_p[l + 1], jnp.bfloat16),  # MXU dtype
            _pad2d(b, 1, dims_p[l + 1], jnp.float32),            # f32 bias add
        )
        for l, (w, b) in enumerate(zip(weights, biases))
    )
    return table_p, layers


# ---------------------------------------------------------------------------
# Pallas kernel
# ---------------------------------------------------------------------------
def _embedder_kernel(num_layers, steps_ref, table_ref, *refs):
    # refs = (w_0, b_0, ..., w_{L-1}, b_{L-1}, out_ref)
    out_ref = refs[2 * num_layers]
    tb = steps_ref.shape[0]          # batch tile
    s_pad = table_ref.shape[0]       # padded table length

    # Table lookup as a one-hot matmul on the MXU (no scalar gather loop).
    # one_hot (0/1) is exactly representable in bf16; the table is pre-cast to
    # bf16 in the wrapper -> single-pass bf16 MXU matmul, f32 accumulation.
    iota = lax.broadcasted_iota(jnp.int32, (tb, s_pad), 1)
    one_hot = (iota == steps_ref[...]).astype(jnp.bfloat16)   # [tb, s_pad]
    h = jnp.dot(one_hot, table_ref[...], preferred_element_type=jnp.float32)

    # Remaining (Linear + SiLU) layers. Weights arrive pre-cast to bf16; only
    # the activations are cast per layer. f32 accumulation, f32 elementwise.
    for l in range(num_layers):
        w = refs[2 * l][...]          # [in_pad, out_pad] bf16 (zero-padded)
        b = refs[2 * l + 1][...]      # [1, out_pad] f32 (zero-padded)
        h = jnp.dot(
            h.astype(jnp.bfloat16), w, preferred_element_type=jnp.float32
        ) + b
        # SiLU = h * sigmoid(h) = h / (1 + exp(-h)); exp + approx recip -> EUP.
        h = h * pl.reciprocal(1.0 + jnp.exp(-h), approx=True)

    out_ref[...] = h.astype(out_ref.dtype)


# ---------------------------------------------------------------------------
# Wrapper: tile the batch, call the kernel.  Jitted so clip/pad/slice fuse.
# ---------------------------------------------------------------------------
@functools.partial(jax.jit, static_argnames=("total_steps", "channels"))
def embedder_forward(steps, table_p, layers, *, total_steps, channels):
    """steps: [B] int; (table_p, layers) from prepare_embedder_params."""
    B = steps.shape[0]
    s_pad, d0_pad = table_p.shape
    num_layers = len(layers)
    c_pad = layers[-1][0].shape[1] if num_layers else d0_pad

    b8 = _round_up(max(B, 1), 8)
    if b8 <= 8:
        tb = b8
    else:
        # >=2 grid steps so the "parallel" axis can shard across v7x's two
        # TensorCores; keep tiles big (<=256 rows) to amortize the ~0.35 us
        # per-grid-step overhead.  VMEM footprint is <0.5 MiB either way.
        tb = min(256, max(8, _round_up(b8 // 2, 8)))
    b_pad = _round_up(b8, tb)
    grid = (b_pad // tb,)

    # Clamp step indices (no in-kernel bounds check).  NOTE: padded batch rows
    # carry step=0 and therefore hold real row-0 values in the padded output;
    # they are sliced off below and must never be reduced over by a consumer.
    steps_i = jnp.clip(steps.astype(jnp.int32), 0, total_steps - 1)
    steps_p = jnp.zeros((b_pad, 1), jnp.int32).at[:B, 0].set(steps_i)

    args = [steps_p, table_p]
    # Table / weights / biases are grid-invariant (index_map == (0, 0)), so
    # Mosaic keeps them resident across grid steps.  (pipeline_mode=
    # pl.Buffered(1) would make single-buffering explicit, but at <0.5 MiB
    # resident it buys nothing.)
    in_specs = [
        pl.BlockSpec((tb, 1), lambda i: (i, 0)),
        pl.BlockSpec((s_pad, d0_pad), lambda i: (0, 0)),
    ]
    for w_p, b_p in layers:
        args += [w_p, b_p]
        in_specs += [
            pl.BlockSpec(w_p.shape, lambda i: (0, 0)),
            pl.BlockSpec(b_p.shape, lambda i: (0, 0)),
        ]

    out = pl.pallas_call(
        functools.partial(_embedder_kernel, num_layers),
        grid=grid,
        in_specs=in_specs,
        out_specs=pl.BlockSpec((tb, c_pad), lambda i: (i, 0)),
        out_shape=jax.ShapeDtypeStruct((b_pad, c_pad), jnp.float32),
        compiler_params=pltpu.CompilerParams(dimension_semantics=("parallel",)),
    )(*args)

    return out[:B, :channels]


# ---------------------------------------------------------------------------
# Pure-JAX f32 reference (matches the PyTorch module)
# ---------------------------------------------------------------------------
def embedder_ref(steps, buffer, weights, biases):
    h = buffer[steps]
    for w, b in zip(weights, biases):
        h = h @ w + jnp.asarray(b).reshape(1, -1)
        h = h * jax.nn.sigmoid(h)
    return h


if __name__ == "__main__":
    # Module hyper-params: Embedder(pe=32, channels=32, steps=64, layers=2)
    PE = 32
    CHANNELS = 32
    TOTAL_STEPS = 64
    LAYERS = 2
    B = 8

    key = jax.random.PRNGKey(0)

    buffer = sinusoidal(TOTAL_STEPS, PE)

    # PyTorch-Linear-style init; weights stored pre-transposed as [in, out].
    dims = [PE] + [CHANNELS] * LAYERS
    weights, biases = [], []
    for l in range(LAYERS):
        key, kw, kb = jax.random.split(key, 3)
        bound = 1.0 / np.sqrt(dims[l])
        weights.append(
            jax.random.uniform(kw, (dims[l], dims[l + 1]), jnp.float32, -bound, bound)
        )
        biases.append(
            jax.random.uniform(kb, (1, dims[l + 1]), jnp.float32, -bound, bound)
        )

    key, ks = jax.random.split(key)
    steps = jax.random.randint(ks, (B,), 0, TOTAL_STEPS, dtype=jnp.int32)

    # One-off parameter prep (would be cached alongside the module params).
    table_p, layer_params = prepare_embedder_params(
        buffer, weights, biases, fold_first_layer=True
    )

    out = jax.block_until_ready(
        embedder_forward(
            steps, table_p, layer_params, total_steps=TOTAL_STEPS, channels=CHANNELS
        )
    )
    ref = embedder_ref(steps, buffer, weights, biases)

    assert out.shape == (B, CHANNELS)
    # bf16 table / MXU operands + approx-reciprocal SiLU => looser tolerance
    # vs the pure-f32 reference (documented per perf review; use approx=False
    # and an f32 table if a tighter budget is ever needed — both are ~free).
    err = float(jnp.max(jnp.abs(out - ref)))
    assert jnp.allclose(out, ref, atol=5e-2, rtol=5e-2), f"max abs err = {err}"

    print("KERNEL_OK")
</pallas_src>

<mosaic_0001>
module attributes {stable_mosaic.version = 11 : i64} {
  func.func @_embedder_kernel(%arg0: i32, %arg1: memref<8x1xi32, #tpu.memory_space<vmem>>, %arg2: memref<64x128xbf16, #tpu.memory_space<vmem>>, %arg3: memref<128x128xbf16, #tpu.memory_space<vmem>>, %arg4: memref<1x128xf32, #tpu.memory_space<vmem>>, %arg5: memref<8x128xf32, #tpu.memory_space<vmem>>) attributes {dimension_semantics = [#tpu.dimension_semantics<parallel>], iteration_bounds = array<i64: 1>, scalar_prefetch = 0 : i64, scratch_operands = 0 : i64, tpu.core_type = #tpu.core_type<tc>, window_params = [{transform_indices = @transform_0, window_bounds = array<i64: 8, 1>}, {pipeline_mode = #tpu.pipeline_mode<synchronous>, transform_indices = @transform_1, window_bounds = array<i64: 64, 128>}, {pipeline_mode = #tpu.pipeline_mode<synchronous>, transform_indices = @transform_2, window_bounds = array<i64: 128, 128>}, {pipeline_mode = #tpu.pipeline_mode<synchronous>, transform_indices = @transform_3, window_bounds = array<i64: 1, 128>}, {transform_indices = @transform_4, window_bounds = array<i64: 8, 128>}]} {
    %0 = tpu.iota {dimensions = array<i32: 1>} : vector<8x64xi32>
    %c0 = arith.constant 0 : index
    %c0_0 = arith.constant 0 : index
    %1 = vector.load %arg1[%c0, %c0_0] : memref<8x1xi32, #tpu.memory_space<vmem>>, vector<8x1xi32>
    %2 = vector.broadcast %1 : vector<8x1xi32> to vector<8x64xi32>
    %3 = arith.cmpi eq, %0, %2 : vector<8x64xi32>
    %4 = arith.extui %3 : vector<8x64xi1> to vector<8x64xi32>
    %5 = arith.sitofp %4 : vector<8x64xi32> to vector<8x64xf32>
    %6 = arith.truncf %5 : vector<8x64xf32> to vector<8x64xbf16>
    %c0_1 = arith.constant 0 : index
    %c0_2 = arith.constant 0 : index
    %7 = vector.load %arg2[%c0_1, %c0_2] : memref<64x128xbf16, #tpu.memory_space<vmem>>, vector<64x128xbf16>
    %cst = arith.constant dense<0.000000e+00> : vector<8x128xf32>
    %8 = tpu.matmul %6, %7, %cst {dimension_numbers = #tpu.dot_dimension_numbers<[1], [0], [0], [1], [0, 0, 1, 1], [], []>} : vector<8x64xbf16>, vector<64x128xbf16>, vector<8x128xf32> -> vector<8x128xf32>
    %c0_3 = arith.constant 0 : index
    %c0_4 = arith.constant 0 : index
    %9 = vector.load %arg3[%c0_3, %c0_4] : memref<128x128xbf16, #tpu.memory_space<vmem>>, vector<128x128xbf16>
    %c0_5 = arith.constant 0 : index
    %c0_6 = arith.constant 0 : index
    %10 = vector.load %arg4[%c0_5, %c0_6] : memref<1x128xf32, #tpu.memory_space<vmem>>, vector<1x128xf32>
    %11 = arith.truncf %8 : vector<8x128xf32> to vector<8x128xbf16>
    %cst_7 = arith.constant dense<0.000000e+00> : vector<8x128xf32>
    %12 = tpu.matmul %11, %9, %cst_7 {dimension_numbers = #tpu.dot_dimension_numbers<[1], [0], [0], [1], [0, 0, 1, 1], [], []>} : vector<8x128xbf16>, vector<128x128xbf16>, vector<8x128xf32> -> vector<8x128xf32>
    %13 = vector.broadcast %10 : vector<1x128xf32> to vector<8x128xf32>
    %14 = arith.addf %12, %13 : vector<8x128xf32>
    %cst_8 = arith.constant 0.000000e+00 : f32
    %15 = vector.broadcast %cst_8 : f32 to vector<8x128xf32>
    %16 = arith.subf %15, %14 : vector<8x128xf32>
    %17 = math.exp %16 : vector<8x128xf32>
    %cst_9 = arith.constant 1.000000e+00 : f32
    %18 = vector.broadcast %cst_9 : f32 to vector<8x128xf32>
    %19 = arith.addf %18, %17 : vector<8x128xf32>
    %20 = tpu.reciprocal %19 {approx = true} : vector<8x128xf32> -> vector<8x128xf32>
    %21 = arith.mulf %14, %20 : vector<8x128xf32>
    %c0_10 = arith.constant 0 : index
    %c0_11 = arith.constant 0 : index
    %22 = vector.load %arg5[%c0_10, %c0_11] : memref<8x128xf32, #tpu.memory_space<vmem>>, vector<8x128xf32>
    tpu.vector_store %arg5[%c0_10, %c0_11], %21 {strides = array<i32>} : memref<8x128xf32, #tpu.memory_space<vmem>>, vector<8x128xf32>,
    return
  }
  func.func @transform_0(%arg0: i32) -> (i32, i32) {
    %c0_i32 = arith.constant 0 : i32
    %c0_i32_0 = arith.constant 0 : i32
    return %arg0, %c0_i32 : i32, i32
  }
  func.func @transform_1(%arg0: i32) -> (i32, i32) {
    %c0_i32 = arith.constant 0 : i32
    %c0_i32_0 = arith.constant 0 : i32
    %c0_i32_1 = arith.constant 0 : i32
    return %c0_i32, %c0_i32_0 : i32, i32
  }
  func.func @transform_2(%arg0: i32) -> (i32, i32) {
    %c0_i32 = arith.constant 0 : i32
    %c0_i32_0 = arith.constant 0 : i32
    %c0_i32_1 = arith.constant 0 : i32
    return %c0_i32, %c0_i32_0 : i32, i32
  }
  func.func @transform_3(%arg0: i32) -> (i32, i32) {
    %c0_i32 = arith.constant 0 : i32
    %c0_i32_0 = arith.constant 0 : i32
    %c0_i32_1 = arith.constant 0 : i32
    return %c0_i32, %c0_i32_0 : i32, i32
  }
  func.func @transform_4(%arg0: i32) -> (i32, i32) {
    %c0_i32 = arith.constant 0 : i32
    %c0_i32_0 = arith.constant 0 : i32
    return %arg0, %c0_i32 : i32, i32
  }
}

</mosaic_0001>

<llo_original>
// kernel: embedder_forward.1
$region0: #{embedder_forward.1}
  #allocation0 [shape = 'u32[]', space=smem, size = 0x4, offset = 0x4, fixed_abs, tag = 'smem constant byte address 0x4 - core index']
  #allocation1 [shape = 'u32[72,128]{1,0:T(1,128)}', space=vmem, size = 0x9000, scoped, tag = 'internal scratch']
  %s0 = inlined_call_operand.vmem [shape: s32[8,1], index: 0, kind: input, shape index: {}]
  %s1 = inlined_call_operand.hbm [shape: bf16[64,128], index: 1, kind: input, shape index: {}]
  %s2 = inlined_call_operand.hbm [shape: bf16[128,128], index: 2, kind: input, shape index: {}]
  %s3 = inlined_call_operand.vmem [shape: f32[1,128], index: 3, kind: input, shape index: {}]
  %s4 = inlined_call_operand.hbm [shape: f32[8,128], index: 4, kind: output, shape index: {}]
  %s5 = sld [smem:[#allocation0]]
  $region34: #{embedder_forward.1} parent=0
    _
  %s7 = ssub.s32 1, %s5
  %s8 = scalar_select 0, %s7, %s5
  $region1: #{embedder_forward.1} parent=0
    #allocation2 [shape = 'u8[16384]{0}', space=vmem, size = 0x4000, scoped, tag = 'input window, operand 1, single buffered']
    #allocation3 [shape = 's32[1]{0}', space=sflag, size = 0x4, scoped, tag = 'scoped memory for embedder_forward.1']
    #allocation4 [shape = 's32[1]{0}', space=sflag, size = 0x4, scoped, tag = 'scoped memory for embedder_forward.1']
    #allocation5 [shape = 'u8[32768]{0}', space=vmem, size = 0x8000, scoped, tag = 'input window, operand 2, single buffered']
    #allocation6 [shape = 's32[1]{0}', space=sflag, size = 0x4, scoped, tag = 'scoped memory for embedder_forward.1']
    #allocation7 [shape = 'u8[4096]{0}', space=vmem, size = 0x1000, scoped, tag = 'output window, operand 0, single buffered']
    %9 = vsyncpa [#allocation3], 0
    %10 = vsyncpa [#allocation6], 0
    %11 = vsyncpa [#allocation4], 0
    // Predicated region
    $region2: #{embedder_forward.1} parent=1 // pred_check
      _
    $region3: #{embedder_forward.1} parent=1 // pred_check_branch
      %13 = sbr.rel (0) target = $region5
    $region4: #{embedder_forward.1} parent=1 // pred_region
      _
    $region5: #{embedder_forward.1} parent=1 // pred_fallthru
      _
    // Predicated region
    $region6: #{embedder_forward.1} parent=1 // pred_check
      _
    $region7: #{embedder_forward.1} parent=1 // pred_check_branch
      %15 = sbr.rel (0) target = $region9
    $region8: #{embedder_forward.1} parent=1 // pred_region
      %17 = vsyncadd [#allocation3], 0
      %s18 = sshll.u32 %s1, 4
      %s19 = int_to_ptr.hbm [resolvable:$true] %s18
      %s20 = sshll.u32 [#allocation2], 4
      %s21 = int_to_ptr.vmem [resolvable:$true] %s20
      %26 = dma.hbm_to_vmem [thread:$0]  %s19, 512, %s21, [#allocation3], 64, 64, 4
    $region9: #{embedder_forward.1} parent=1 // pred_fallthru
      _
    // Predicated region
    $region10: #{embedder_forward.1} parent=1 // pred_check
      _
    $region11: #{embedder_forward.1} parent=1 // pred_check_branch
      %28 = sbr.rel (0) target = $region13
    $region12: #{embedder_forward.1} parent=1 // pred_region
      %30 = vsyncadd [#allocation6], 0
      %s31 = sshll.u32 %s2, 4
      %s32 = int_to_ptr.hbm [resolvable:$true] %s31
      %s33 = sshll.u32 [#allocation5], 4
      %s34 = int_to_ptr.vmem [resolvable:$true] %s33
      %39 = dma.hbm_to_vmem [thread:$0]  %s32, 1024, %s34, [#allocation6], 64, 64, 4
    $region13: #{embedder_forward.1} parent=1 // pred_fallthru
      _
    // Predicated region
    $region14: #{embedder_forward.1} parent=1 // pred_check
      _
    $region15: #{embedder_forward.1} parent=1 // pred_check_branch
      %41 = sbr.rel (0) target = $region17
    $region16: #{embedder_forward.1} parent=1 // pred_region
      _
    $region17: #{embedder_forward.1} parent=1 // pred_fallthru
      _
    // Predicated region
    $region18: #{embedder_forward.1} parent=1 // pred_check
      _
    $region19: #{embedder_forward.1} parent=1 // pred_check_branch
      %43 = sbr.rel (0) target = $region21
    $region20: #{embedder_forward.1} parent=1 // pred_region
      %45 = dma.done [#allocation3], 512
    $region21: #{embedder_forward.1} parent=1 // pred_fallthru
      _
    // Predicated region
    $region22: #{embedder_forward.1} parent=1 // pred_check
      _
    $region23: #{embedder_forward.1} parent=1 // pred_check_branch
      %47 = sbr.rel (0) target = $region25
    $region24: #{embedder_forward.1} parent=1 // pred_region
      %49 = dma.done [#allocation6], 1024
    $region25: #{embedder_forward.1} parent=1 // pred_fallthru
      _
    %v51 = vlaneseq
    %v52 = vand.u32 %v51, 127
    %v53 = vld [vmem:[%s0] sm:$0xff]
    %54 = vset.pattern.permute.xlu0 0
    %55 = vperm.xlu0 %54, %v53
    %v56 = vpop.permute.xlu0 %55
    %vm57 = vcmp.eq.s32.totalorder %v52, %v56
    %v58 = vsel %vm57, 1, 0
    %v59 = vcvt.s32.f32 %v58
    %v60 = vpack.c.bf16 %v59, %v59
    %v61 = vld [vmem:[#allocation2] sm:$0xf]
    %v62 = vld [vmem:[#allocation2 + $0x4] sm:$0xf]
    %v63 = vld [vmem:[#allocation2 + $0x8] sm:$0xf]
    %v64 = vld [vmem:[#allocation2 + $0xc] sm:$0xf]
    %v65 = vld [vmem:[#allocation2 + $0x10] sm:$0xf]
    %v66 = vld [vmem:[#allocation2 + $0x14] sm:$0xf]
    %v67 = vld [vmem:[#allocation2 + $0x18] sm:$0xf]
    %v68 = vld [vmem:[#allocation2 + $0x1c] sm:$0xf]
    %v77 = vunpack.c.l.b16 %v61
    %v78 = vunpack.c.l.b16 %v62
    %v79 = vunpack.c.l.b16 %v63
    %v80 = vunpack.c.l.b16 %v64
    %v81 = vunpack.c.l.b16 %v65
    %v82 = vunpack.c.l.b16 %v66
    %v83 = vunpack.c.l.b16 %v67
    %v84 = vunpack.c.l.b16 %v68
    %v85 = vpack.c.b16 %v78, %v77
    %v86 = vpack.c.b16 %v80, %v79
    %v87 = vpack.c.b16 %v82, %v81
    %v88 = vpack.c.b16 %v84, %v83
    %vm93 = vcmask 523264
    %v95 = vsel %vm93, %v60, 0
    %97 = vmatpush.bf16.msra.mxu0 0
    %98 = vmatpush.bf16.msra.mxu0 0
    %99 = vmatpush.bf16.msra.mxu0 0
    %100 = vmatpush.bf16.msra.mxu0 0
    %101 = vmatpush.bf16.msra.mxu0 %v88
    %102 = vmatpush.bf16.msra.mxu0 %v87
    %103 = vmatpush.bf16.msra.mxu0 %v86
    %104 = vmatpush.bf16.msra.mxu0 %v85
    %105 = vmatmul.bf16.gmra.mxu0 %v95
    %v106 = vpop.f32.mrf.mxu0
    %v107 = vadd.f32 0.0, %v106
    %v108 = vpop.f32.mrf.mxu0
    %109 = vdwg.mxu0
    %v110 = vld [vmem:[#allocation5] sm:$0xf]
    %v111 = vld [vmem:[#allocation5 + $0x4] sm:$0xf]
    %v112 = vld [vmem:[#allocation5 + $0x8] sm:$0xf]
    %v113 = vld [vmem:[#allocation5 + $0xc] sm:$0xf]
    %v114 = vld [vmem:[#allocation5 + $0x10] sm:$0xf]
    %v115 = vld [vmem:[#allocation5 + $0x14] sm:$0xf]
    %v116 = vld [vmem:[#allocation5 + $0x18] sm:$0xf]
    %v117 = vld [vmem:[#allocation5 + $0x1c] sm:$0xf]
    %v118 = vld [vmem:[#allocation5 + $0x20] sm:$0xf]
    %v119 = vld [vmem:[#allocation5 + $0x24] sm:$0xf]
    %v120 = vld [vmem:[#allocation5 + $0x28] sm:$0xf]
    %v121 = vld [vmem:[#allocation5 + $0x2c] sm:$0xf]
    %v122 = vld [vmem:[#allocation5 + $0x30] sm:$0xf]
    %v123 = vld [vmem:[#allocation5 + $0x34] sm:$0xf]
    %v124 = vld [vmem:[#allocation5 + $0x38] sm:$0xf]
    %v125 = vld [vmem:[#allocation5 + $0x3c] sm:$0xf]
    %v126 = vld [vmem:[%s3] sm:$0x1]
    %v127 = vpack.c.bf16 %v107, %v107
    %v129 = vperm.slane %v126, 0
    %v147 = vunpack.c.l.b16 %v110
    %v148 = vunpack.c.l.b16 %v111
    %v149 = vunpack.c.l.b16 %v112
    %v150 = vunpack.c.l.b16 %v113
    %v151 = vunpack.c.l.b16 %v114
    %v152 = vunpack.c.l.b16 %v115
    %v153 = vunpack.c.l.b16 %v116
    %v154 = vunpack.c.l.b16 %v117
    %v155 = vunpack.c.l.b16 %v118
    %v156 = vunpack.c.l.b16 %v119
    %v157 = vunpack.c.l.b16 %v120
    %v158 = vunpack.c.l.b16 %v121
    %v159 = vunpack.c.l.b16 %v122
    %v160 = vunpack.c.l.b16 %v123
    %v161 = vunpack.c.l.b16 %v124
    %v162 = vunpack.c.l.b16 %v125
    %v163 = vpack.c.b16 %v148, %v147
    %v164 = vpack.c.b16 %v150, %v149
    %v165 = vpack.c.b16 %v152, %v151
    %v166 = vpack.c.b16 %v154, %v153
    %v167 = vpack.c.b16 %v156, %v155
    %v168 = vpack.c.b16 %v158, %v157
    %v169 = vpack.c.b16 %v160, %v159
    %v170 = vpack.c.b16 %v162, %v161
    %179 = vmatpush.bf16.msra.mxu0 %v170
    %180 = vmatpush.bf16.msra.mxu0 %v169
    %181 = vmatpush.bf16.msra.mxu0 %v168
    %182 = vmatpush.bf16.msra.mxu0 %v167
    %183 = vmatpush.bf16.msra.mxu0 %v166
    %184 = vmatpush.bf16.msra.mxu0 %v165
    %185 = vmatpush.bf16.msra.mxu0 %v164
    %186 = vmatpush.bf16.msra.mxu0 %v163
    %187 = vmatmul.bf16.gmra.mxu0 %v127
    %v188 = vpop.f32.mrf.mxu0
    %v189 = vadd.f32 %v129, %v188
    %v190 = vpop.f32.mrf.mxu0
    %191 = vdwg.mxu0
    %v192 = vsub.f32 0.0, %v189
    %v193 = vmul.f32 %v192, 1.442695
    %v194 = vpow.pop %v193
    %v195 = vadd.f32 %v194, 1.0
    %v196 = vrcp.pop %v195
    %v197 = vmul.f32 %v189, %v196
    %198 = vst [vmem:[#allocation7] sm:$0xff] %v197
    // Predicated region
    $region26: #{embedder_forward.1} parent=1 // pred_check
      _
    $region27: #{embedder_forward.1} parent=1 // pred_check_branch
      %200 = sbr.rel (0) target = $region29
    $region28: #{embedder_forward.1} parent=1 // pred_region
      %202 = vsyncadd [#allocation4], 0
      %s204 = sshll.u32 [#allocation7], 4
      %s205 = int_to_ptr.vmem [resolvable:$true] %s204
      %s206 = sshll.u32 %s4, 4
      %s207 = int_to_ptr.hbm [resolvable:$true] %s206
      %209 = dma.vmem_to_hbm [thread:$0]  %s205, 128, %s207, [#allocation4]
    $region29: #{embedder_forward.1} parent=1 // pred_fallthru
      _
    // Predicated region
    $region30: #{embedder_forward.1} parent=1 // pred_check
      _
    $region31: #{embedder_forward.1} parent=1 // pred_check_branch
      %211 = sbr.rel (0) target = $region33
    $region32: #{embedder_forward.1} parent=1 // pred_region
      %213 = dma.done [#allocation4], 128
    $region33: #{embedder_forward.1} parent=1 // pred_fallthru
      _
    %214 = vsyncpa [#allocation3], 1
    %215 = vsyncpa [#allocation6], 1
    %216 = vsyncpa [#allocation4], 1

</llo_original>
